<compile_context>
chip_gen: v5e
topology: v5e:2x2
jax: 0.10.0
libtpu: 0.0.40
codegen_flags: <defaults>
</compile_context>

<pallas_src>
import math

import jax
import jax.numpy as jnp
from jax import lax
from jax.experimental import pallas as pl
from jax.experimental.pallas import tpu as pltpu

# Small, module-consistent hyper-parameters.
NHID = 32
NHEAD = 4
HEAD_DIM = 8
L = 8
B = 2
REF_N_ITER = 50      # entmax_bisect library default (used by the pure-JAX reference)
KERNEL_N_ITER = 32   # bisection is bit-stable in f32 well before 32 iters (checked vs reference)


def clamp_max(x, val):
    # ClampMax(x, val) = x.clamp(min=0).sub(val).clamp(max=0).add(val) + x.clamp(max=0)
    return jnp.minimum(jnp.maximum(x, 0.0) - val, 0.0) + val + jnp.minimum(x, 0.0)


def _safe_pow(base, expo):
    # base >= 0; pow via exp/log with 0**p -> 0 (p > 0). exp/log run on the EUP.
    pos = base > 0.0
    safe = jnp.where(pos, base, 1.0)
    return jnp.where(pos, jnp.exp(expo * jnp.log(safe)), 0.0)


def _entmax_bisect_axis1(X, am1, inv_am1, n_iter):
    """alpha-entmax along axis=1 of X:(B, L, H); am1 / inv_am1: (B, 1, H).

    Simplified bisection (perf review): f(tau_lo) >= 0 always (the row max contributes
    exactly 1 to the sum), so the accept condition is just f_m >= 0, and p_m is not
    carried through the loop -- it is recomputed once from the final tau.
    """
    d = X.shape[1]
    Xs = X * am1                                            # (B, L, H)
    inv_am1_f = jnp.broadcast_to(inv_am1, X.shape)          # hoist broadcast out of the loop
    max_val = jnp.max(Xs, axis=1, keepdims=True)            # (B, 1, H)
    tau_lo = max_val - 1.0                                  # 1 ** (alpha - 1) == 1
    tau_hi = max_val - jnp.exp(am1 * math.log(1.0 / d))     # (1/d) ** (alpha - 1)
    dm0 = tau_hi - tau_lo

    def body(_, carry):
        tau_lo, dm = carry
        dm = dm * 0.5
        tau_m = tau_lo + dm
        p_m = _safe_pow(jnp.maximum(Xs - tau_m, 0.0), inv_am1_f)
        f_m = jnp.sum(p_m, axis=1, keepdims=True) - 1.0
        tau_lo = jnp.where(f_m >= 0.0, tau_m, tau_lo)
        return (tau_lo, dm)

    tau_lo, _ = lax.fori_loop(0, n_iter, body, (tau_lo, dm0))
    p = _safe_pow(jnp.maximum(Xs - tau_lo, 0.0), inv_am1_f)
    # Exact divide for the final normalization (approx reciprocal would risk the 1e-4 check).
    return p / jnp.sum(p, axis=1, keepdims=True)


def _star_attention_kernel(alpha_ref, xr_ref, y_ref,
                           wq_ref, bq_ref, wk_ref, bk_ref, wv_ref, bv_ref,
                           wo_ref, bo_ref, seg_ref, segt_ref, out_ref):
    # Single invocation, everything resident in VMEM:
    #   alpha_ref: (1,) f32 in SMEM
    #   xr_ref   : (B*L, NHID)  star token repeated L times per batch
    #   y_ref    : (B*L, NHID)  sequence tokens (channels-last)
    #   wq/wk/wv : (NHID, NHEAD*HEAD_DIM)   bq/bk/bv: (1, NHEAD*HEAD_DIM)
    #   wo       : (NHEAD*HEAD_DIM, NHID)   bo      : (1, NHID)
    #   seg      : (NHEAD*HEAD_DIM, NHEAD) 0/1 head-segment matrix; segt = seg.T
    #   out_ref  : (B, NHID)
    b, nhid = out_ref.shape
    bl = y_ref.shape[0]
    l = bl // b
    nhead = seg_ref.shape[1]
    hdim = seg_ref.shape[0] // nhead
    inv_scale = 1.0 / math.sqrt(float(hdim))

    # alpha: SMEM scalar -> clamp -> per-row (B, 1, NHEAD) am1 / 1/am1 (computed once).
    alpha_s = alpha_ref[0]
    alpha_v = clamp_max(alpha_s * jnp.ones((b, 1, nhead), jnp.float32), 10.0)
    am1 = alpha_v - 1.0
    inv_am1 = 1.0 / am1

    xr = xr_ref[...]
    y = y_ref[...]

    # Fused projections: three lane-dense MXU matmuls over all batches / heads at once.
    q = jnp.dot(xr, wq_ref[...], preferred_element_type=jnp.float32) + bq_ref[...]  # (B*L, H*D)
    k = jnp.dot(y, wk_ref[...], preferred_element_type=jnp.float32) + bk_ref[...]   # (B*L, H*D)
    v = jnp.dot(y, wv_ref[...], preferred_element_type=jnp.float32) + bv_ref[...]   # (B*L, H*D)

    # Scores: broadcast-multiply (VPU) + per-head segment-sum (one small MXU matmul).
    prod = q * k                                                                     # (B*L, H*D)
    pre = jnp.dot(prod, seg_ref[...],
                  preferred_element_type=jnp.float32) * inv_scale                    # (B*L, H)
    pre = pre.reshape(b, l, nhead)                                                   # (B, L, H)
    # TODO(synk): optional `mask` (masked_fill with -inf along L) not wired in; example uses mask=None.

    # ONE batched entmax bisection across all B*NHEAD rows (reduction over the L axis).
    a = _entmax_bisect_axis1(pre, am1, inv_am1, KERNEL_N_ITER)                       # (B, L, H)
    # TODO(synk): nn.Dropout on the attention weights is identity in eval mode; not implemented.

    # Attention-weighted value sum: expand head weights across their HEAD_DIM lanes,
    # multiply with V, reduce over L (sublane groups of size L).
    a_exp = jnp.dot(a.reshape(bl, nhead), segt_ref[...],
                    preferred_element_type=jnp.float32)                              # (B*L, H*D)
    att = jnp.sum((a_exp * v).reshape(b, l, nhead * hdim), axis=1)                   # (B, H*D)

    # Output projection: a single (B, H*D) @ (H*D, NHID) matmul + bias.
    out_ref[...] = jnp.dot(att, wo_ref[...], preferred_element_type=jnp.float32) + bo_ref[...]


def multi_headed_star_attention(x_nchw, y_nchw, params):
    """x_nchw: (B, NHID, 1, 1), y_nchw: (B, NHID, L, 1). Returns (B, NHID, 1, 1)."""
    b = x_nchw.shape[0]
    l = y_nchw.shape[2]
    md = NHEAD * HEAD_DIM

    # Layout plumbing (channels-last, lane-dense), done once in the wrapper.
    x2d = x_nchw.reshape(b, NHID)
    y2d = jnp.transpose(y_nchw.reshape(b, NHID, l), (0, 2, 1)).reshape(b * l, NHID)
    x_rep = jnp.repeat(x2d, l, axis=0)                       # (B*L, NHID): row b*L+i == x[b]
    # 0/1 head-segment matrix: seg[h*HEAD_DIM + d, h] == 1
    seg = (jnp.arange(md)[:, None] // HEAD_DIM ==
           jnp.arange(NHEAD)[None, :]).astype(jnp.float32)   # (H*D, H)
    seg_t = seg.T                                            # (H, H*D)
    alpha = params["alpha"].reshape(1).astype(jnp.float32)

    def full2d(shape):
        return pl.BlockSpec(shape, lambda i, _s=shape: (0,) * len(_s))

    out2d = pl.pallas_call(
        _star_attention_kernel,
        out_shape=jax.ShapeDtypeStruct((b, NHID), jnp.float32),
        grid=(1,),   # single invocation: all batches / heads processed together
        in_specs=[
            pl.BlockSpec(memory_space=pltpu.MemorySpace.SMEM),   # alpha (scalar)
            full2d((b * l, NHID)),                               # x_rep
            full2d((b * l, NHID)),                               # y
            full2d((NHID, md)), full2d((1, md)),                 # wq, bq
            full2d((NHID, md)), full2d((1, md)),                 # wk, bk
            full2d((NHID, md)), full2d((1, md)),                 # wv, bv
            full2d((md, NHID)), full2d((1, NHID)),               # wo, bo
            full2d((md, NHEAD)), full2d((NHEAD, md)),            # seg, seg_t
        ],
        out_specs=pl.BlockSpec((b, NHID), lambda i: (0, 0)),
        compiler_params=pltpu.CompilerParams(dimension_semantics=("arbitrary",)),
    )(alpha, x_rep, y2d,
      params["wq"], params["bq"], params["wk"], params["bk"],
      params["wv"], params["bv"], params["wo"], params["bo"], seg, seg_t)

    # back to NCHW: (B, NHID, 1, 1)
    return out2d.reshape(b, NHID, 1, 1)


# ----------------------------- pure-JAX reference -----------------------------

def entmax_bisect_ref(X, alpha, n_iter=REF_N_ITER):
    """Original entmax_bisect forward semantics over the last axis (pure JAX)."""
    d = X.shape[-1]
    am1 = alpha - 1.0
    inv_am1 = 1.0 / am1
    Xs = X * am1
    max_val = jnp.max(Xs, axis=-1, keepdims=True)
    tau_lo = max_val - 1.0
    tau_hi = max_val - jnp.exp(am1 * math.log(1.0 / d))
    f_lo = jnp.sum(_safe_pow(jnp.maximum(Xs - tau_lo, 0.0), inv_am1),
                   axis=-1, keepdims=True) - 1.0
    dm0 = tau_hi - tau_lo
    p0 = jnp.zeros_like(Xs)

    def body(_, carry):
        tau_lo, dm, _p = carry
        dm = dm * 0.5
        tau_m = tau_lo + dm
        p_m = _safe_pow(jnp.maximum(Xs - tau_m, 0.0), inv_am1)
        f_m = jnp.sum(p_m, axis=-1, keepdims=True) - 1.0
        cond = (f_m * f_lo) >= 0.0
        tau_lo = jnp.where(cond, tau_m, tau_lo)
        return (tau_lo, dm, p_m)

    _, _, p_m = lax.fori_loop(0, n_iter, body, (tau_lo, dm0, p0))
    return p_m / jnp.sum(p_m, axis=-1, keepdims=True)


def reference(x_nchw, y_nchw, params):
    """Pure-JAX reference of the torch forward (eval mode, mask=None)."""
    b = x_nchw.shape[0]
    l = y_nchw.shape[2]
    x = x_nchw.reshape(b, NHID)
    y = jnp.transpose(y_nchw.reshape(b, NHID, l), (0, 2, 1))          # (B, L, NHID)
    alpha = clamp_max(params["alpha"].reshape(1, 1), 10.0)
    hp = "highest"
    q = (jnp.einsum("bn,nm->bm", x, params["wq"], precision=hp)
         + params["bq"]).reshape(b, NHEAD, HEAD_DIM)
    k = (jnp.einsum("bln,nm->blm", y, params["wk"], precision=hp)
         + params["bk"]).reshape(b, l, NHEAD, HEAD_DIM)
    v = (jnp.einsum("bln,nm->blm", y, params["wv"], precision=hp)
         + params["bv"]).reshape(b, l, NHEAD, HEAD_DIM)
    pre = jnp.einsum("bhd,blhd->bhl", q, k, precision=hp) / (float(HEAD_DIM) ** 0.5)
    a = entmax_bisect_ref(pre, alpha)                                 # (B, H, L)
    att = jnp.einsum("bhl,blhd->bhd", a, v, precision=hp).reshape(b, NHEAD * HEAD_DIM)
    out = jnp.einsum("bm,mn->bn", att, params["wo"], precision=hp) + params["bo"]
    return out.reshape(b, NHID, 1, 1)


if __name__ == "__main__":
    key = jax.random.PRNGKey(0)
    keys = jax.random.split(key, 10)

    def w(k, shape, scale=0.1):
        return (scale * jax.random.normal(k, shape)).astype(jnp.float32)

    params = {
        "wq": w(keys[0], (NHID, NHEAD * HEAD_DIM)),
        "bq": w(keys[1], (1, NHEAD * HEAD_DIM)),
        "wk": w(keys[2], (NHID, NHEAD * HEAD_DIM)),
        "bk": w(keys[3], (1, NHEAD * HEAD_DIM)),
        "wv": w(keys[4], (NHID, NHEAD * HEAD_DIM)),
        "bv": w(keys[5], (1, NHEAD * HEAD_DIM)),
        "wo": w(keys[6], (NHEAD * HEAD_DIM, NHID)),
        "bo": w(keys[7], (1, NHID)),
        "alpha": jnp.array([1.5], dtype=jnp.float32),  # nn.Parameter([1.5])
    }

    # PyTorch NCHW conv inputs: x is the star node (1x1 spatial), y is the sequence (Lx1).
    x_nchw = jax.random.normal(keys[8], (B, NHID, 1, 1), dtype=jnp.float32)
    y_nchw = jax.random.normal(keys[9], (B, NHID, L, 1), dtype=jnp.float32)

    out = multi_headed_star_attention(x_nchw, y_nchw, params)
    out = jax.block_until_ready(out)

    ref = jax.block_until_ready(reference(x_nchw, y_nchw, params))
    assert out.shape == (B, NHID, 1, 1), out.shape
    assert bool(jnp.all(jnp.isfinite(out)))
    assert bool(jnp.allclose(out, ref, atol=1e-4, rtol=1e-3)), (
        float(jnp.max(jnp.abs(out - ref))))
    print("KERNEL_OK")
</pallas_src>

<mosaic_0001>
module attributes {stable_mosaic.version = 11 : i64} {
  func.func @_star_attention_kernel(%arg0: i32, %arg1: memref<1xf32, #tpu.memory_space<smem>>, %arg2: memref<16x32xf32, #tpu.memory_space<vmem>>, %arg3: memref<16x32xf32, #tpu.memory_space<vmem>>, %arg4: memref<32x32xf32, #tpu.memory_space<vmem>>, %arg5: memref<1x32xf32, #tpu.memory_space<vmem>>, %arg6: memref<32x32xf32, #tpu.memory_space<vmem>>, %arg7: memref<1x32xf32, #tpu.memory_space<vmem>>, %arg8: memref<32x32xf32, #tpu.memory_space<vmem>>, %arg9: memref<1x32xf32, #tpu.memory_space<vmem>>, %arg10: memref<32x32xf32, #tpu.memory_space<vmem>>, %arg11: memref<1x32xf32, #tpu.memory_space<vmem>>, %arg12: memref<32x4xf32, #tpu.memory_space<vmem>>, %arg13: memref<4x32xf32, #tpu.memory_space<vmem>>, %arg14: memref<2x32xf32, #tpu.memory_space<vmem>>) attributes {dimension_semantics = [#tpu.dimension_semantics<arbitrary>], iteration_bounds = array<i64: 1>, scalar_prefetch = 0 : i64, scratch_operands = 0 : i64, tpu.core_type = #tpu.core_type<tc>, window_params = [{transform_indices = @transform_0, window_bounds = array<i64: 1>}, {pipeline_mode = #tpu.pipeline_mode<synchronous>, transform_indices = @transform_1, window_bounds = array<i64: 16, 32>}, {pipeline_mode = #tpu.pipeline_mode<synchronous>, transform_indices = @transform_2, window_bounds = array<i64: 16, 32>}, {pipeline_mode = #tpu.pipeline_mode<synchronous>, transform_indices = @transform_3, window_bounds = array<i64: 32, 32>}, {pipeline_mode = #tpu.pipeline_mode<synchronous>, transform_indices = @transform_4, window_bounds = array<i64: 1, 32>}, {pipeline_mode = #tpu.pipeline_mode<synchronous>, transform_indices = @transform_5, window_bounds = array<i64: 32, 32>}, {pipeline_mode = #tpu.pipeline_mode<synchronous>, transform_indices = @transform_6, window_bounds = array<i64: 1, 32>}, {pipeline_mode = #tpu.pipeline_mode<synchronous>, transform_indices = @transform_7, window_bounds = array<i64: 32, 32>}, {pipeline_mode = #tpu.pipeline_mode<synchronous>, transform_indices = @transform_8, window_bounds = array<i64: 1, 32>}, {pipeline_mode = #tpu.pipeline_mode<synchronous>, transform_indices = @transform_9, window_bounds = array<i64: 32, 32>}, {pipeline_mode = #tpu.pipeline_mode<synchronous>, transform_indices = @transform_10, window_bounds = array<i64: 1, 32>}, {pipeline_mode = #tpu.pipeline_mode<synchronous>, transform_indices = @transform_11, window_bounds = array<i64: 32, 4>}, {pipeline_mode = #tpu.pipeline_mode<synchronous>, transform_indices = @transform_12, window_bounds = array<i64: 4, 32>}, {pipeline_mode = #tpu.pipeline_mode<synchronous>, transform_indices = @transform_13, window_bounds = array<i64: 2, 32>}]} {
    %c0 = arith.constant 0 : index
    %0 = memref.load %arg1[%c0] : memref<1xf32, #tpu.memory_space<smem>>
    %cst = arith.constant 1.000000e+00 : f32
    %1 = vector.broadcast %cst : f32 to vector<2x1x4xf32>
    %2 = vector.broadcast %0 : f32 to vector<2x1x4xf32>
    %3 = arith.mulf %2, %1 : vector<2x1x4xf32>
    %cst_0 = arith.constant 0.000000e+00 : f32
    %4 = vector.broadcast %cst_0 : f32 to vector<2x1x4xf32>
    %5 = arith.maximumf %3, %4 : vector<2x1x4xf32>
    %cst_1 = arith.constant 1.000000e+01 : f32
    %6 = vector.broadcast %cst_1 : f32 to vector<2x1x4xf32>
    %7 = arith.subf %5, %6 : vector<2x1x4xf32>
    %cst_2 = arith.constant 0.000000e+00 : f32
    %8 = vector.broadcast %cst_2 : f32 to vector<2x1x4xf32>
    %9 = arith.minimumf %7, %8 : vector<2x1x4xf32>
    %cst_3 = arith.constant 1.000000e+01 : f32
    %10 = vector.broadcast %cst_3 : f32 to vector<2x1x4xf32>
    %11 = arith.addf %9, %10 : vector<2x1x4xf32>
    %cst_4 = arith.constant 0.000000e+00 : f32
    %12 = vector.broadcast %cst_4 : f32 to vector<2x1x4xf32>
    %13 = arith.minimumf %3, %12 : vector<2x1x4xf32>
    %14 = arith.addf %11, %13 : vector<2x1x4xf32>
    %cst_5 = arith.constant 1.000000e+00 : f32
    %15 = vector.broadcast %cst_5 : f32 to vector<2x1x4xf32>
    %16 = arith.subf %14, %15 : vector<2x1x4xf32>
    %cst_6 = arith.constant 1.000000e+00 : f32
    %17 = vector.broadcast %cst_6 : f32 to vector<2x1x4xf32>
    %18 = arith.divf %17, %16 : vector<2x1x4xf32>
    %c0_7 = arith.constant 0 : index
    %c0_8 = arith.constant 0 : index
    %19 = vector.load %arg2[%c0_7, %c0_8] : memref<16x32xf32, #tpu.memory_space<vmem>>, vector<16x32xf32>
    %c0_9 = arith.constant 0 : index
    %c0_10 = arith.constant 0 : index
    %20 = vector.load %arg3[%c0_9, %c0_10] : memref<16x32xf32, #tpu.memory_space<vmem>>, vector<16x32xf32>
    %c0_11 = arith.constant 0 : index
    %c0_12 = arith.constant 0 : index
    %21 = vector.load %arg4[%c0_11, %c0_12] : memref<32x32xf32, #tpu.memory_space<vmem>>, vector<32x32xf32>
    %cst_13 = arith.constant dense<0.000000e+00> : vector<16x32xf32>
    %22 = tpu.matmul %19, %21, %cst_13 {dimension_numbers = #tpu.dot_dimension_numbers<[1], [0], [0], [1], [0, 0, 1, 1], [], []>} : vector<16x32xf32>, vector<32x32xf32>, vector<16x32xf32> -> vector<16x32xf32>
    %c0_14 = arith.constant 0 : index
    %c0_15 = arith.constant 0 : index
    %23 = vector.load %arg5[%c0_14, %c0_15] : memref<1x32xf32, #tpu.memory_space<vmem>>, vector<1x32xf32>
    %24 = vector.broadcast %23 : vector<1x32xf32> to vector<16x32xf32>
    %25 = arith.addf %22, %24 : vector<16x32xf32>
    %c0_16 = arith.constant 0 : index
    %c0_17 = arith.constant 0 : index
    %26 = vector.load %arg6[%c0_16, %c0_17] : memref<32x32xf32, #tpu.memory_space<vmem>>, vector<32x32xf32>
    %cst_18 = arith.constant dense<0.000000e+00> : vector<16x32xf32>
    %27 = tpu.matmul %20, %26, %cst_18 {dimension_numbers = #tpu.dot_dimension_numbers<[1], [0], [0], [1], [0, 0, 1, 1], [], []>} : vector<16x32xf32>, vector<32x32xf32>, vector<16x32xf32> -> vector<16x32xf32>
    %c0_19 = arith.constant 0 : index
    %c0_20 = arith.constant 0 : index
    %28 = vector.load %arg7[%c0_19, %c0_20] : memref<1x32xf32, #tpu.memory_space<vmem>>, vector<1x32xf32>
    %29 = vector.broadcast %28 : vector<1x32xf32> to vector<16x32xf32>
    %30 = arith.addf %27, %29 : vector<16x32xf32>
    %c0_21 = arith.constant 0 : index
    %c0_22 = arith.constant 0 : index
    %31 = vector.load %arg8[%c0_21, %c0_22] : memref<32x32xf32, #tpu.memory_space<vmem>>, vector<32x32xf32>
    %cst_23 = arith.constant dense<0.000000e+00> : vector<16x32xf32>
    %32 = tpu.matmul %20, %31, %cst_23 {dimension_numbers = #tpu.dot_dimension_numbers<[1], [0], [0], [1], [0, 0, 1, 1], [], []>} : vector<16x32xf32>, vector<32x32xf32>, vector<16x32xf32> -> vector<16x32xf32>
    %c0_24 = arith.constant 0 : index
    %c0_25 = arith.constant 0 : index
    %33 = vector.load %arg9[%c0_24, %c0_25] : memref<1x32xf32, #tpu.memory_space<vmem>>, vector<1x32xf32>
    %34 = vector.broadcast %33 : vector<1x32xf32> to vector<16x32xf32>
    %35 = arith.addf %32, %34 : vector<16x32xf32>
    %36 = arith.mulf %25, %30 : vector<16x32xf32>
    %c0_26 = arith.constant 0 : index
    %c0_27 = arith.constant 0 : index
    %37 = vector.load %arg12[%c0_26, %c0_27] : memref<32x4xf32, #tpu.memory_space<vmem>>, vector<32x4xf32>
    %cst_28 = arith.constant dense<0.000000e+00> : vector<16x4xf32>
    %38 = tpu.matmul %36, %37, %cst_28 {dimension_numbers = #tpu.dot_dimension_numbers<[1], [0], [0], [1], [0, 0, 1, 1], [], []>} : vector<16x32xf32>, vector<32x4xf32>, vector<16x4xf32> -> vector<16x4xf32>
    %cst_29 = arith.constant 0.353553385 : f32
    %39 = vector.broadcast %cst_29 : f32 to vector<16x4xf32>
    %40 = arith.mulf %38, %39 : vector<16x4xf32>
    %41 = vector.shape_cast %40 : vector<16x4xf32> to vector<2x8x4xf32>
    %42 = vector.broadcast %16 : vector<2x1x4xf32> to vector<2x8x4xf32>
    %43 = arith.mulf %41, %42 : vector<2x8x4xf32>
    %44 = vector.shape_cast %18 : vector<2x1x4xf32> to vector<2x1x4xf32>
    %45 = vector.broadcast %44 : vector<2x1x4xf32> to vector<2x8x4xf32>
    %cst_30 = arith.constant dense<0xFF800000> : vector<2x4xf32>
    %46 = vector.multi_reduction <maximumf>, %43, %cst_30 [1] : vector<2x8x4xf32> to vector<2x4xf32>
    %47 = vector.shape_cast %46 : vector<2x4xf32> to vector<2x1x4xf32>
    %cst_31 = arith.constant 1.000000e+00 : f32
    %48 = vector.broadcast %cst_31 : f32 to vector<2x1x4xf32>
    %49 = arith.subf %47, %48 : vector<2x1x4xf32>
    %cst_32 = arith.constant -2.07944155 : f32
    %50 = vector.broadcast %cst_32 : f32 to vector<2x1x4xf32>
    %51 = arith.mulf %16, %50 : vector<2x1x4xf32>
    %52 = math.exp %51 : vector<2x1x4xf32>
    %53 = arith.subf %47, %52 : vector<2x1x4xf32>
    %54 = arith.subf %53, %49 : vector<2x1x4xf32>
    %c0_i32 = arith.constant 0 : i32
    %c32_i32 = arith.constant 32 : i32
    %55 = arith.addi %c0_i32, %c32_i32 : i32
    %c1_i32 = arith.constant 1 : i32
    %56:2 = scf.for %arg15 = %c0_i32 to %55 step %c1_i32 iter_args(%arg16 = %49, %arg17 = %54) -> (vector<2x1x4xf32>, vector<2x1x4xf32>)  : i32 {
      %cst_49 = arith.constant 5.000000e-01 : f32
      %86 = vector.broadcast %cst_49 : f32 to vector<2x1x4xf32>
      %87 = arith.mulf %arg17, %86 : vector<2x1x4xf32>
      %88 = arith.addf %arg16, %87 : vector<2x1x4xf32>
      %89 = vector.broadcast %88 : vector<2x1x4xf32> to vector<2x8x4xf32>
      %90 = arith.subf %43, %89 : vector<2x8x4xf32>
      %cst_50 = arith.constant 0.000000e+00 : f32
      %91 = vector.broadcast %cst_50 : f32 to vector<2x8x4xf32>
      %92 = arith.maximumf %90, %91 : vector<2x8x4xf32>
      %cst_51 = arith.constant 0.000000e+00 : f32
      %93 = vector.broadcast %cst_51 : f32 to vector<2x8x4xf32>
      %94 = arith.cmpf ogt, %92, %93 : vector<2x8x4xf32>
      %cst_52 = arith.constant 1.000000e+00 : f32
      %95 = vector.broadcast %cst_52 : f32 to vector<2x8x4xf32>
      %96 = arith.select %94, %92, %95 : vector<2x8x4xi1>, vector<2x8x4xf32>
      %97 = math.log %96 : vector<2x8x4xf32>
      %98 = arith.mulf %45, %97 : vector<2x8x4xf32>
      %99 = math.exp %98 : vector<2x8x4xf32>
      %cst_53 = arith.constant 0.000000e+00 : f32
      %100 = vector.broadcast %cst_53 : f32 to vector<2x8x4xf32>
      %101 = arith.select %94, %99, %100 : vector<2x8x4xi1>, vector<2x8x4xf32>
      %cst_54 = arith.constant dense<0.000000e+00> : vector<2x4xf32>
      %102 = vector.multi_reduction <add>, %101, %cst_54 [1] : vector<2x8x4xf32> to vector<2x4xf32>
      %103 = vector.shape_cast %102 : vector<2x4xf32> to vector<2x1x4xf32>
      %cst_55 = arith.constant 1.000000e+00 : f32
      %104 = vector.broadcast %cst_55 : f32 to vector<2x1x4xf32>
      %105 = arith.subf %103, %104 : vector<2x1x4xf32>
      %cst_56 = arith.constant 0.000000e+00 : f32
      %106 = vector.broadcast %cst_56 : f32 to vector<2x1x4xf32>
      %107 = arith.cmpf oge, %105, %106 : vector<2x1x4xf32>
      %108 = arith.select %107, %88, %arg16 : vector<2x1x4xi1>, vector<2x1x4xf32>
      scf.yield %108, %87 : vector<2x1x4xf32>, vector<2x1x4xf32>
    }
    %57 = vector.broadcast %56#0 : vector<2x1x4xf32> to vector<2x8x4xf32>
    %58 = arith.subf %43, %57 : vector<2x8x4xf32>
    %cst_33 = arith.constant 0.000000e+00 : f32
    %59 = vector.broadcast %cst_33 : f32 to vector<2x8x4xf32>
    %60 = arith.maximumf %58, %59 : vector<2x8x4xf32>
    %cst_34 = arith.constant 0.000000e+00 : f32
    %61 = vector.broadcast %cst_34 : f32 to vector<2x8x4xf32>
    %62 = arith.cmpf ogt, %60, %61 : vector<2x8x4xf32>
    %cst_35 = arith.constant 1.000000e+00 : f32
    %63 = vector.broadcast %cst_35 : f32 to vector<2x8x4xf32>
    %64 = arith.select %62, %60, %63 : vector<2x8x4xi1>, vector<2x8x4xf32>
    %65 = math.log %64 : vector<2x8x4xf32>
    %66 = arith.mulf %45, %65 : vector<2x8x4xf32>
    %67 = math.exp %66 : vector<2x8x4xf32>
    %cst_36 = arith.constant 0.000000e+00 : f32
    %68 = vector.broadcast %cst_36 : f32 to vector<2x8x4xf32>
    %69 = arith.select %62, %67, %68 : vector<2x8x4xi1>, vector<2x8x4xf32>
    %cst_37 = arith.constant dense<0.000000e+00> : vector<2x4xf32>
    %70 = vector.multi_reduction <add>, %69, %cst_37 [1] : vector<2x8x4xf32> to vector<2x4xf32>
    %71 = vector.shape_cast %70 : vector<2x4xf32> to vector<2x1x4xf32>
    %72 = vector.broadcast %71 : vector<2x1x4xf32> to vector<2x8x4xf32>
    %73 = arith.divf %69, %72 : vector<2x8x4xf32>
    %74 = vector.shape_cast %73 : vector<2x8x4xf32> to vector<16x4xf32>
    %c0_38 = arith.constant 0 : index
    %c0_39 = arith.constant 0 : index
    %75 = vector.load %arg13[%c0_38, %c0_39] : memref<4x32xf32, #tpu.memory_space<vmem>>, vector<4x32xf32>
    %cst_40 = arith.constant dense<0.000000e+00> : vector<16x32xf32>
    %76 = tpu.matmul %74, %75, %cst_40 {dimension_numbers = #tpu.dot_dimension_numbers<[1], [0], [0], [1], [0, 0, 1, 1], [], []>} : vector<16x4xf32>, vector<4x32xf32>, vector<16x32xf32> -> vector<16x32xf32>
    %77 = arith.mulf %76, %35 : vector<16x32xf32>
    %78 = vector.shape_cast %77 : vector<16x32xf32> to vector<2x8x32xf32>
    %cst_41 = arith.constant dense<0.000000e+00> : vector<2x32xf32>
    %79 = vector.multi_reduction <add>, %78, %cst_41 [1] : vector<2x8x32xf32> to vector<2x32xf32>
    %c0_42 = arith.constant 0 : index
    %c0_43 = arith.constant 0 : index
    %80 = vector.load %arg10[%c0_42, %c0_43] : memref<32x32xf32, #tpu.memory_space<vmem>>, vector<32x32xf32>
    %cst_44 = arith.constant dense<0.000000e+00> : vector<2x32xf32>
    %81 = tpu.matmul %79, %80, %cst_44 {dimension_numbers = #tpu.dot_dimension_numbers<[1], [0], [0], [1], [0, 0, 1, 1], [], []>} : vector<2x32xf32>, vector<32x32xf32>, vector<2x32xf32> -> vector<2x32xf32>
    %c0_45 = arith.constant 0 : index
    %c0_46 = arith.constant 0 : index
    %82 = vector.load %arg11[%c0_45, %c0_46] : memref<1x32xf32, #tpu.memory_space<vmem>>, vector<1x32xf32>
    %83 = vector.broadcast %82 : vector<1x32xf32> to vector<2x32xf32>
    %84 = arith.addf %81, %83 : vector<2x32xf32>
    %c0_47 = arith.constant 0 : index
    %c0_48 = arith.constant 0 : index
    %85 = vector.load %arg14[%c0_47, %c0_48] : memref<2x32xf32, #tpu.memory_space<vmem>>, vector<2x32xf32>
    tpu.vector_store %arg14[%c0_47, %c0_48], %84 {strides = array<i32>} : memref<2x32xf32, #tpu.memory_space<vmem>>, vector<2x32xf32>,
    return
  }
  func.func @transform_0(%arg0: i32) -> i32 {
    %c0_i32 = arith.constant 0 : i32
    %c0_i32_0 = arith.constant 0 : i32
    return %c0_i32 : i32
  }
  func.func @transform_1(%arg0: i32) -> (i32, i32) {
    %c0_i32 = arith.constant 0 : i32
    %c0_i32_0 = arith.constant 0 : i32
    %c0_i32_1 = arith.constant 0 : i32
    return %c0_i32, %c0_i32_0 : i32, i32
  }
  func.func @transform_2(%arg0: i32) -> (i32, i32) {
    %c0_i32 = arith.constant 0 : i32
    %c0_i32_0 = arith.constant 0 : i32
    %c0_i32_1 = arith.constant 0 : i32
    return %c0_i32, %c0_i32_0 : i32, i32
  }
  func.func @transform_3(%arg0: i32) -> (i32, i32) {
    %c0_i32 = arith.constant 0 : i32
    %c0_i32_0 = arith.constant 0 : i32
    %c0_i32_1 = arith.constant 0 : i32
    return %c0_i32, %c0_i32_0 : i32, i32
  }
  func.func @transform_4(%arg0: i32) -> (i32, i32) {
    %c0_i32 = arith.constant 0 : i32
    %c0_i32_0 = arith.constant 0 : i32
    %c0_i32_1 = arith.constant 0 : i32
    return %c0_i32, %c0_i32_0 : i32, i32
  }
  func.func @transform_5(%arg0: i32) -> (i32, i32) {
    %c0_i32 = arith.constant 0 : i32
    %c0_i32_0 = arith.constant 0 : i32
    %c0_i32_1 = arith.constant 0 : i32
    return %c0_i32, %c0_i32_0 : i32, i32
  }
  func.func @transform_6(%arg0: i32) -> (i32, i32) {
    %c0_i32 = arith.constant 0 : i32
    %c0_i32_0 = arith.constant 0 : i32
    %c0_i32_1 = arith.constant 0 : i32
    return %c0_i32, %c0_i32_0 : i32, i32
  }
  func.func @transform_7(%arg0: i32) -> (i32, i32) {
    %c0_i32 = arith.constant 0 : i32
    %c0_i32_0 = arith.constant 0 : i32
    %c0_i32_1 = arith.constant 0 : i32
    return %c0_i32, %c0_i32_0 : i32, i32
  }
  func.func @transform_8(%arg0: i32) -> (i32, i32) {
    %c0_i32 = arith.constant 0 : i32
    %c0_i32_0 = arith.constant 0 : i32
    %c0_i32_1 = arith.constant 0 : i32
    return %c0_i32, %c0_i32_0 : i32, i32
  }
  func.func @transform_9(%arg0: i32) -> (i32, i32) {
    %c0_i32 = arith.constant 0 : i32
    %c0_i32_0 = arith.constant 0 : i32
    %c0_i32_1 = arith.constant 0 : i32
    return %c0_i32, %c0_i32_0 : i32, i32
  }
  func.func @transform_10(%arg0: i32) -> (i32, i32) {
    %c0_i32 = arith.constant 0 : i32
    %c0_i32_0 = arith.constant 0 : i32
    %c0_i32_1 = arith.constant 0 : i32
    return %c0_i32, %c0_i32_0 : i32, i32
  }
  func.func @transform_11(%arg0: i32) -> (i32, i32) {
    %c0_i32 = arith.constant 0 : i32
    %c0_i32_0 = arith.constant 0 : i32
    %c0_i32_1 = arith.constant 0 : i32
    return %c0_i32, %c0_i32_0 : i32, i32
  }
  func.func @transform_12(%arg0: i32) -> (i32, i32) {
    %c0_i32 = arith.constant 0 : i32
    %c0_i32_0 = arith.constant 0 : i32
    %c0_i32_1 = arith.constant 0 : i32
    return %c0_i32, %c0_i32_0 : i32, i32
  }
  func.func @transform_13(%arg0: i32) -> (i32, i32) {
    %c0_i32 = arith.constant 0 : i32
    %c0_i32_0 = arith.constant 0 : i32
    %c0_i32_1 = arith.constant 0 : i32
    return %c0_i32, %c0_i32_0 : i32, i32
  }
}

</mosaic_0001>

<llo_original>
// kernel: tpu_custom_call.1
$region0: #{tpu_custom_call.1}
  #allocation0 [shape = 'u32[]', space=smem, size = 0x4, offset = 0x4, fixed_abs, tag = 'smem constant byte address 0x4 - core index']
  #allocation1 [shape = 'u32[72,128]{1,0:T(1,128)}', space=vmem, size = 0x9000, scoped, tag = 'internal scratch']
  #allocation2 [shape = 'f32[1]{0:T(128)S(6)}', space=smem, size = 0x200, scoped, tag = 'scoped memory for tpu_custom_call.1']
  %s0 = inlined_call_operand.<no memory space> [shape: f32[1], index: 0, kind: input, shape index: {}]
  %s1 = inlined_call_operand.hbm [shape: f32[16,32], index: 1, kind: input, shape index: {}]
  %s2 = inlined_call_operand.hbm [shape: f32[16,32], index: 2, kind: input, shape index: {}]
  %s3 = inlined_call_operand.vmem [shape: f32[32,32], index: 3, kind: input, shape index: {}]
  %s4 = inlined_call_operand.vmem [shape: f32[1,32], index: 4, kind: input, shape index: {}]
  %s5 = inlined_call_operand.hbm [shape: f32[32,32], index: 5, kind: input, shape index: {}]
  %s6 = inlined_call_operand.vmem [shape: f32[1,32], index: 6, kind: input, shape index: {}]
  %s7 = inlined_call_operand.hbm [shape: f32[32,32], index: 7, kind: input, shape index: {}]
  %s8 = inlined_call_operand.vmem [shape: f32[1,32], index: 8, kind: input, shape index: {}]
  %s9 = inlined_call_operand.hbm [shape: f32[32,32], index: 9, kind: input, shape index: {}]
  %s10 = inlined_call_operand.vmem [shape: f32[1,32], index: 10, kind: input, shape index: {}]
  %s11 = inlined_call_operand.vmem [shape: f32[32,4], index: 11, kind: input, shape index: {}]
  %s12 = inlined_call_operand.vmem [shape: f32[4,32], index: 12, kind: input, shape index: {}]
  %s13 = inlined_call_operand.hbm [shape: f32[2,32], index: 13, kind: output, shape index: {}]
  %s14 = sld [smem:[#allocation0]]
  $region89: #{tpu_custom_call.1} parent=0
    _
  %s16 = ssub.s32 1, %s14
  %s17 = scalar_select 0, %s16, %s14
  %18 = sst [smem:[#allocation2]] %s0
  $region1: #{tpu_custom_call.1} parent=0
    #allocation3 [shape = 'u8[8192]{0}', space=vmem, size = 0x2000, scoped, tag = 'input window, operand 1, single buffered']
    #allocation4 [shape = 's32[1]{0}', space=sflag, size = 0x4, scoped, tag = 'scoped memory for tpu_custom_call.1']
    #allocation5 [shape = 's32[1]{0}', space=sflag, size = 0x4, scoped, tag = 'scoped memory for tpu_custom_call.1']
    #allocation6 [shape = 'u8[8192]{0}', space=vmem, size = 0x2000, scoped, tag = 'input window, operand 2, single buffered']
    #allocation7 [shape = 's32[1]{0}', space=sflag, size = 0x4, scoped, tag = 'scoped memory for tpu_custom_call.1']
    #allocation8 [shape = 'u8[16384]{0}', space=vmem, size = 0x4000, scoped, tag = 'input window, operand 5, single buffered']
    #allocation9 [shape = 'u8[16384]{0}', space=vmem, size = 0x4000, scoped, tag = 'input window, operand 7, single buffered']
    #allocation10 [shape = 's32[1]{0}', space=sflag, size = 0x4, scoped, tag = 'scoped memory for tpu_custom_call.1']
    #allocation11 [shape = 'u8[16384]{0}', space=vmem, size = 0x4000, scoped, tag = 'input window, operand 9, single buffered']
    #allocation12 [shape = 'u8[1024]{0}', space=vmem, size = 0x400, scoped, tag = 'output window, operand 0, single buffered']
    %19 = vsyncpa [#allocation4], 0
    %20 = vsyncpa [#allocation7], 0
    %21 = vsyncpa [#allocation10], 0
    %22 = vsyncpa [#allocation5], 0
    // Predicated region
    $region2: #{tpu_custom_call.1} parent=1 // pred_check
      _
    $region3: #{tpu_custom_call.1} parent=1 // pred_check_branch
      %24 = sbr.rel (0) target = $region5
    $region4: #{tpu_custom_call.1} parent=1 // pred_region
      _
    $region5: #{tpu_custom_call.1} parent=1 // pred_fallthru
      _
    // Predicated region
    $region6: #{tpu_custom_call.1} parent=1 // pred_check
      _
    $region7: #{tpu_custom_call.1} parent=1 // pred_check_branch
      %26 = sbr.rel (0) target = $region9
    $region8: #{tpu_custom_call.1} parent=1 // pred_region
      %28 = vsyncadd [#allocation4], 0
      %s29 = sshll.u32 %s1, 4
      %s30 = int_to_ptr.hbm [resolvable:$true] %s29
      %s31 = sshll.u32 [#allocation3], 4
      %s32 = int_to_ptr.vmem [resolvable:$true] %s31
      %37 = dma.hbm_to_vmem [thread:$0]  %s30, 256, %s32, [#allocation4], 128, 128, 8
    $region9: #{tpu_custom_call.1} parent=1 // pred_fallthru
      _
    // Predicated region
    $region10: #{tpu_custom_call.1} parent=1 // pred_check
      _
    $region11: #{tpu_custom_call.1} parent=1 // pred_check_branch
      %39 = sbr.rel (0) target = $region13
    $region12: #{tpu_custom_call.1} parent=1 // pred_region
      %41 = vsyncadd [#allocation7], 0
      %s42 = sshll.u32 %s2, 4
      %s43 = int_to_ptr.hbm [resolvable:$true] %s42
      %s44 = sshll.u32 [#allocation6], 4
      %s45 = int_to_ptr.vmem [resolvable:$true] %s44
      %50 = dma.hbm_to_vmem [thread:$0]  %s43, 256, %s45, [#allocation7], 128, 128, 8
    $region13: #{tpu_custom_call.1} parent=1 // pred_fallthru
      _
    // Predicated region
    $region14: #{tpu_custom_call.1} parent=1 // pred_check
      _
    $region15: #{tpu_custom_call.1} parent=1 // pred_check_branch
      %52 = sbr.rel (0) target = $region17
    $region16: #{tpu_custom_call.1} parent=1 // pred_region
      _
    $region17: #{tpu_custom_call.1} parent=1 // pred_fallthru
      _
    // Predicated region
    $region18: #{tpu_custom_call.1} parent=1 // pred_check
      _
    $region19: #{tpu_custom_call.1} parent=1 // pred_check_branch
      %54 = sbr.rel (0) target = $region21
    $region20: #{tpu_custom_call.1} parent=1 // pred_region
      _
    $region21: #{tpu_custom_call.1} parent=1 // pred_fallthru
      _
    // Predicated region
    $region22: #{tpu_custom_call.1} parent=1 // pred_check
      _
    $region23: #{tpu_custom_call.1} parent=1 // pred_check_branch
      %56 = sbr.rel (0) target = $region25
    $region24: #{tpu_custom_call.1} parent=1 // pred_region
      %58 = vsyncadd [#allocation7], 0
      %s59 = sshll.u32 %s5, 4
      %s60 = int_to_ptr.hbm [resolvable:$true] %s59
      %s61 = sshll.u32 [#allocation8], 4
      %s62 = int_to_ptr.vmem [resolvable:$true] %s61
      %67 = dma.hbm_to_vmem [thread:$0]  %s60, 512, %s62, [#allocation7], 128, 128, 8
    $region25: #{tpu_custom_call.1} parent=1 // pred_fallthru
      _
    // Predicated region
    $region26: #{tpu_custom_call.1} parent=1 // pred_check
      _
    $region27: #{tpu_custom_call.1} parent=1 // pred_check_branch
      %69 = sbr.rel (0) target = $region29
    $region28: #{tpu_custom_call.1} parent=1 // pred_region
      _
    $region29: #{tpu_custom_call.1} parent=1 // pred_fallthru
      _
    // Predicated region
    $region30: #{tpu_custom_call.1} parent=1 // pred_check
      _
    $region31: #{tpu_custom_call.1} parent=1 // pred_check_branch
      %71 = sbr.rel (0) target = $region33
    $region32: #{tpu_custom_call.1} parent=1 // pred_region
      %73 = vsyncadd [#allocation10], 0
      %s74 = sshll.u32 %s7, 4
      %s75 = int_to_ptr.hbm [resolvable:$true] %s74
      %s76 = sshll.u32 [#allocation9], 4
      %s77 = int_to_ptr.vmem [resolvable:$true] %s76
      %82 = dma.hbm_to_vmem [thread:$0]  %s75, 512, %s77, [#allocation10], 128, 128, 8
    $region33: #{tpu_custom_call.1} parent=1 // pred_fallthru
      _
    // Predicated region
    $region34: #{tpu_custom_call.1} parent=1 // pred_check
      _
    $region35: #{tpu_custom_call.1} parent=1 // pred_check_branch
      %84 = sbr.rel (0) target = $region37
    $region36: #{tpu_custom_call.1} parent=1 // pred_region
      _
    $region37: #{tpu_custom_call.1} parent=1 // pred_fallthru
      _
    // Predicated region
    $region38: #{tpu_custom_call.1} parent=1 // pred_check
      _
    $region39: #{tpu_custom_call.1} parent=1 // pred_check_branch
      %86 = sbr.rel (0) target = $region41
    $region40: #{tpu_custom_call.1} parent=1 // pred_region
      %88 = vsyncadd [#allocation10], 0
      %s89 = sshll.u32 %s9, 4
      %s90 = int_to_ptr.hbm [resolvable:$true] %s89
      %s91 = sshll.u32 [#allocation11], 4
      %s92 = int_to_ptr.vmem [resolvable:$true] %s91
      %97 = dma.hbm_to_vmem [thread:$0]  %s90, 512, %s92, [#allocation10], 128, 128, 8
    $region41: #{tpu_custom_call.1} parent=1 // pred_fallthru
      _
    // Predicated region
    $region42: #{tpu_custom_call.1} parent=1 // pred_check
      _
    $region43: #{tpu_custom_call.1} parent=1 // pred_check_branch
      %99 = sbr.rel (0) target = $region45
    $region44: #{tpu_custom_call.1} parent=1 // pred_region
      _
    $region45: #{tpu_custom_call.1} parent=1 // pred_fallthru
      _
    // Predicated region
    $region46: #{tpu_custom_call.1} parent=1 // pred_check
      _
    $region47: #{tpu_custom_call.1} parent=1 // pred_check_branch
      %101 = sbr.rel (0) target = $region49
    $region48: #{tpu_custom_call.1} parent=1 // pred_region
      _
    $region49: #{tpu_custom_call.1} parent=1 // pred_fallthru
      _
    // Predicated region
    $region50: #{tpu_custom_call.1} parent=1 // pred_check
      _
    $region51: #{tpu_custom_call.1} parent=1 // pred_check_branch
      %103 = sbr.rel (0) target = $region53
    $region52: #{tpu_custom_call.1} parent=1 // pred_region
      _
    $region53: #{tpu_custom_call.1} parent=1 // pred_fallthru
      _
    // Predicated region
    $region54: #{tpu_custom_call.1} parent=1 // pred_check
      _
    $region55: #{tpu_custom_call.1} parent=1 // pred_check_branch
      %105 = sbr.rel (0) target = $region57
    $region56: #{tpu_custom_call.1} parent=1 // pred_region
      %107 = dma.done [#allocation4], 256
    $region57: #{tpu_custom_call.1} parent=1 // pred_fallthru
      _
    // Predicated region
    $region58: #{tpu_custom_call.1} parent=1 // pred_check
      _
    $region59: #{tpu_custom_call.1} parent=1 // pred_check_branch
      %109 = sbr.rel (0) target = $region61
    $region60: #{tpu_custom_call.1} parent=1 // pred_region
      %111 = dma.done [#allocation7], 256
    $region61: #{tpu_custom_call.1} parent=1 // pred_fallthru
      _
    // Predicated region
    $region62: #{tpu_custom_call.1} parent=1 // pred_check
      _
    $region63: #{tpu_custom_call.1} parent=1 // pred_check_branch
      %113 = sbr.rel (0) target = $region65
    $region64: #{tpu_custom_call.1} parent=1 // pred_region
      %115 = dma.done [#allocation7], 512
    $region65: #{tpu_custom_call.1} parent=1 // pred_fallthru
      _
    // Predicated region
    $region66: #{tpu_custom_call.1} parent=1 // pred_check
      _
    $region67: #{tpu_custom_call.1} parent=1 // pred_check_branch
      %117 = sbr.rel (0) target = $region69
    $region68: #{tpu_custom_call.1} parent=1 // pred_region
      %119 = dma.done [#allocation10], 512
    $region69: #{tpu_custom_call.1} parent=1 // pred_fallthru
      _
    // Predicated region
    $region70: #{tpu_custom_call.1} parent=1 // pred_check
      _
    $region71: #{tpu_custom_call.1} parent=1 // pred_check_branch
      %121 = sbr.rel (0) target = $region73
    $region72: #{tpu_custom_call.1} parent=1 // pred_region
      %123 = dma.done [#allocation10], 512
    $region73: #{tpu_custom_call.1} parent=1 // pred_fallthru
      _
    %s124 = sld [smem:[#allocation2]]
    %v125 = vstv %s124
    %v126 = vmax.f32 %v125, 0.0
    %v127 = vsub.f32 %v126, 10.0
    %v128 = vmin.f32 %v127, 0.0
    %v129 = vadd.f32 %v128, 10.0
    %v130 = vmin.f32 %v125, 0.0
    %v131 = vadd.f32 %v129, %v130
    %v132 = vsub.f32 %v131, 1.0
    %v133 = vrcp.pop %v132
    %v134 = vmul.f32 %v132, %v133
    %v135 = vsub.f32 1.0, %v134
    %v136 = vmul.f32 %v133, %v135
    %v137 = vadd.f32 %v133, %v136
    %vm138 = vweird.f32 %v132
    %vm139 = vweird.f32 %v133
    %vm140 = vmor %vm138, %vm139
    %v141 = vsel %vm140, %v133, %v137
    %v142 = vand.u32 2147483647, %v132
    %vm143 = vcmp.eq.f32.partialorder %v142, 8.507059e+37
    %v144 = vand.u32 %v132, 2147483648
    %v145 = vor.u32 1.1754944e-38, %v144
    %v146 = vsel %vm143, %v145, %v141
    %v147 = vmul.f32 1.0, %v146
    %v148 = vld [vmem:[#allocation3] sm:$0xff]
    %v149 = vld [vmem:[#allocation3 + $0x8] sm:$0xff]
    %v150 = vld [vmem:[#allocation6] sm:$0xff]
    %v151 = vld [vmem:[#allocation6 + $0x8] sm:$0xff]
    %v152 = vld [vmem:[%s3] sm:$0xff]
    %v153 = vld [vmem:[%s3 + $0x8] sm:$0xff]
    %v154 = vld [vmem:[%s3 + $0x10] sm:$0xff]
    %v155 = vld [vmem:[%s3 + $0x18] sm:$0xff]
    %v156 = vld [vmem:[%s4] sm:$0x1]
    %v158 = vperm.slane %v156, 0
    %vm160 = vcmask 261120
    %v162 = vsel %vm160, %v148, 0
    %v165 = vsel %vm160, %v149, 0
    %167 = vmatpush.msra.mxu0 0.0
    %168 = vmatpush.msra.mxu0 0.0
    %169 = vmatpush.msra.mxu0 0.0
    %170 = vmatpush.msra.mxu0 0.0
    %171 = vmatpush.msra.mxu0 0.0
    %172 = vmatpush.msra.mxu0 0.0
    %173 = vmatpush.msra.mxu0 0.0
    %174 = vmatpush.msra.mxu0 0.0
    %175 = vmatpush.msra.mxu0 0.0
    %176 = vmatpush.msra.mxu0 0.0
    %177 = vmatpush.msra.mxu0 0.0
    %178 = vmatpush.msra.mxu0 0.0
    %179 = vmatpush.msra.mxu0 %v155
    %180 = vmatpush.msra.mxu0 %v154
    %181 = vmatpush.msra.mxu0 %v153
    %182 = vmatpush.msra.mxu0 %v152
    %183 = vmatmul.f32.gmra.mxu0 %v162
    %v184 = vpop.f32.mrf.mxu0
    %v185 = vadd.f32 %v158, %v184
    %186 = vmatmul.f32.gmra.mxu0 %v165
    %v187 = vpop.f32.mrf.mxu0
    %v188 = vadd.f32 %v158, %v187
    %189 = vdwg.mxu0
    %v190 = vld [vmem:[#allocation8] sm:$0xff]
    %v191 = vld [vmem:[#allocation8 + $0x8] sm:$0xff]
    %v192 = vld [vmem:[#allocation8 + $0x10] sm:$0xff]
    %v193 = vld [vmem:[#allocation8 + $0x18] sm:$0xff]
    %v194 = vld [vmem:[%s6] sm:$0x1]
    %v196 = vperm.slane %v194, 0
    %v199 = vsel %vm160, %v150, 0
    %v202 = vsel %vm160, %v151, 0
    %204 = vmatpush.msra.mxu0 0.0
    %205 = vmatpush.msra.mxu0 0.0
    %206 = vmatpush.msra.mxu0 0.0
    %207 = vmatpush.msra.mxu0 0.0
    %208 = vmatpush.msra.mxu0 0.0
    %209 = vmatpush.msra.mxu0 0.0
    %210 = vmatpush.msra.mxu0 0.0
    %211 = vmatpush.msra.mxu0 0.0
    %212 = vmatpush.msra.mxu0 0.0
    %213 = vmatpush.msra.mxu0 0.0
    %214 = vmatpush.msra.mxu0 0.0
    %215 = vmatpush.msra.mxu0 0.0
    %216 = vmatpush.msra.mxu0 %v193
    %217 = vmatpush.msra.mxu0 %v192
    %218 = vmatpush.msra.mxu0 %v191
    %219 = vmatpush.msra.mxu0 %v190
    %220 = vmatmul.f32.gmra.mxu0 %v199
    %v221 = vpop.f32.mrf.mxu0
    %v222 = vadd.f32 %v196, %v221
    %223 = vmatmul.f32.gmra.mxu0 %v202
    %v224 = vpop.f32.mrf.mxu0
    %v225 = vadd.f32 %v196, %v224
    %226 = vdwg.mxu0
    %v227 = vld [vmem:[#allocation9] sm:$0xff]
    %v228 = vld [vmem:[#allocation9 + $0x8] sm:$0xff]
    %v229 = vld [vmem:[#allocation9 + $0x10] sm:$0xff]
    %v230 = vld [vmem:[#allocation9 + $0x18] sm:$0xff]
    %v231 = vld [vmem:[%s8] sm:$0x1]
    %v233 = vperm.slane %v231, 0
    %235 = vmatpush.msra.mxu0 0.0
    %236 = vmatpush.msra.mxu0 0.0
    %237 = vmatpush.msra.mxu0 0.0
    %238 = vmatpush.msra.mxu0 0.0
    %239 = vmatpush.msra.mxu0 0.0
    %240 = vmatpush.msra.mxu0 0.0
    %241 = vmatpush.msra.mxu0 0.0
    %242 = vmatpush.msra.mxu0 0.0
    %243 = vmatpush.msra.mxu0 0.0
    %244 = vmatpush.msra.mxu0 0.0
    %245 = vmatpush.msra.mxu0 0.0
    %246 = vmatpush.msra.mxu0 0.0
    %247 = vmatpush.msra.mxu0 %v230
    %248 = vmatpush.msra.mxu0 %v229
    %249 = vmatpush.msra.mxu0 %v228
    %250 = vmatpush.msra.mxu0 %v227
    %251 = vmatmul.f32.gmra.mxu0 %v199
    %v252 = vpop.f32.mrf.mxu0
    %v253 = vadd.f32 %v233, %v252
    %254 = vmatmul.f32.gmra.mxu0 %v202
    %v255 = vpop.f32.mrf.mxu0
    %v256 = vadd.f32 %v233, %v255
    %257 = vdwg.mxu0
    %v258 = vmul.f32 %v185, %v222
    %v259 = vmul.f32 %v188, %v225
    %v260 = vld [vmem:[%s11] sm:$0xff]
    %v261 = vld [vmem:[%s11 + $0x8] sm:$0xff]
    %v262 = vld [vmem:[%s11 + $0x10] sm:$0xff]
    %v263 = vld [vmem:[%s11 + $0x18] sm:$0xff]
    %v265 = vsel %vm160, %v258, 0
    %v268 = vsel %vm160, %v259, 0
    %270 = vmatpush.msra.mxu0 0.0
    %271 = vmatpush.msra.mxu0 0.0
    %272 = vmatpush.msra.mxu0 0.0
    %273 = vmatpush.msra.mxu0 0.0
    %274 = vmatpush.msra.mxu0 0.0
    %275 = vmatpush.msra.mxu0 0.0
    %276 = vmatpush.msra.mxu0 0.0
    %277 = vmatpush.msra.mxu0 0.0
    %278 = vmatpush.msra.mxu0 0.0
    %279 = vmatpush.msra.mxu0 0.0
    %280 = vmatpush.msra.mxu0 0.0
    %281 = vmatpush.msra.mxu0 0.0
    %282 = vmatpush.msra.mxu0 %v263
    %283 = vmatpush.msra.mxu0 %v262
    %284 = vmatpush.msra.mxu0 %v261
    %285 = vmatpush.msra.mxu0 %v260
    %286 = vmatmul.f32.gmra.mxu0 %v265
    %v287 = vpop.f32.mrf.mxu0
    %v288 = vadd.f32 0.0, %v287
    %289 = vmatmul.f32.gmra.mxu0 %v268
    %v290 = vpop.f32.mrf.mxu0
    %v291 = vadd.f32 0.0, %v290
    %292 = vdwg.mxu0
    %v293 = vmul.f32 %v288, 0.35355338
    %v294 = vmul.f32 %v291, 0.35355338
    %v295 = vmul.f32 %v293, %v132
    %v296 = vmul.f32 %v294, %v132
    %vm297 = vcmask 31744
    %v298 = vsel %vm297, %v295, -inf
    %v299 = vrot.slane %v298, 4
    %v300 = vmax.f32 %v298, %v299
    %v301 = vrot.slane %v300, 2
    %v302 = vmax.f32 %v300, %v301
    %v303 = vrot.slane %v302, 1
    %v304 = vmax.f32 %v302, %v303
    %v305 = vsel %vm297, %v296, -inf
    %v306 = vrot.slane %v305, 4
    %v307 = vmax.f32 %v305, %v306
    %v308 = vrot.slane %v307, 2
    %v309 = vmax.f32 %v307, %v308
    %v310 = vrot.slane %v309, 1
    %v311 = vmax.f32 %v309, %v310
    %v312 = vsub.f32 %v304, 1.0
    %v313 = vsub.f32 %v311, 1.0
    %v314 = vmul.f32 %v132, -2.0794415
    %v315 = vmul.f32 %v314, 1.442695
    %v316 = vpow.pop %v315
    %v317 = vsub.f32 %v304, %v316
    %v318 = vsub.f32 %v311, %v316
    %v319 = vsub.f32 %v317, %v312
    %v320 = vsub.f32 %v318, %v313
    loop: start=0, step=1, limit=32
    $region74: #{tpu_custom_call.1} parent=1 // loop_pre_header
      _
    $region75: #{tpu_custom_call.1} parent=1 // loop_header
      %s322 = sphi 0, %s326
      %p323 = scmp.ge.s32.totalorder %s322, 32
      %v327 = vphi %v312, %v373
      %v328 = vphi %v313, %v374
      %v329 = vphi %v319, %v331
      %v330 = vphi %v320, %v332
    $region76: #{tpu_custom_call.1} parent=1 // loop_header_branch
      %325 = sbr.rel (%p323) target = $region80
    $region77: #{tpu_custom_call.1} parent=1 // loop_body
      %v331 = vmul.f32 %v329, 0.5
      %v332 = vmul.f32 %v330, 0.5
      %v333 = vadd.f32 %v327, %v331
      %v334 = vadd.f32 %v328, %v332
      %v335 = vsub.f32 %v295, %v333
      %v336 = vsub.f32 %v296, %v334
      %v337 = vmax.f32 %v335, 0.0
      %v338 = vmax.f32 %v336, 0.0
      %vm339 = vcmp.gt.f32.partialorder %v337, 0.0
      %vm340 = vcmp.gt.f32.partialorder %v338, 0.0
      %v341 = vsel %vm339, %v337, 1.0
      %v342 = vsel %vm340, %v338, 1.0
      %v343 = vlog2.pop %v341
      %v344 = vmul.f32 %v343, 0.6931472
      %v345 = vlog2.pop %v342
      %v346 = vmul.f32 %v345, 0.6931472
      %v347 = vmul.f32 %v147, %v344
      %v348 = vmul.f32 %v147, %v346
      %v349 = vmul.f32 %v347, 1.442695
      %v350 = vpow.pop %v349
      %v351 = vmul.f32 %v348, 1.442695
      %v352 = vpow.pop %v351
      %v353 = vsel %vm339, %v350, 0.0
      %v354 = vsel %vm340, %v352, 0.0
      %v355 = vsel %vm297, %v353, 0.0
      %v356 = vrot.slane %v355, 4
      %v357 = vadd.f32 %v355, %v356
      %v358 = vrot.slane %v357, 2
      %v359 = vadd.f32 %v357, %v358
      %v360 = vrot.slane %v359, 1
      %v361 = vadd.f32 %v359, %v360
      %v362 = vsel %vm297, %v354, 0.0
      %v363 = vrot.slane %v362, 4
      %v364 = vadd.f32 %v362, %v363
      %v365 = vrot.slane %v364, 2
      %v366 = vadd.f32 %v364, %v365
      %v367 = vrot.slane %v366, 1
      %v368 = vadd.f32 %v366, %v367
      %v369 = vsub.f32 %v361, 1.0
      %v370 = vsub.f32 %v368, 1.0
      %vm371 = vcmp.ge.f32.partialorder %v369, 0.0
      %vm372 = vcmp.ge.f32.partialorder %v370, 0.0
      %v373 = vsel %vm371, %v333, %v327
      %v374 = vsel %vm372, %v334, %v328
    $region78: #{tpu_custom_call.1} parent=1 // loop_footer
      %s326 = sadd.s32 1, %s322
    $region79: #{tpu_custom_call.1} parent=1 // loop_footer_branch
      %321 = sbr.rel target = $region75
    $region80: #{tpu_custom_call.1} parent=1 // loop_exit
      _
    %v375 = vsub.f32 %v295, %v327
    %v376 = vsub.f32 %v296, %v328
    %v377 = vmax.f32 %v375, 0.0
    %v378 = vmax.f32 %v376, 0.0
    %vm379 = vcmp.gt.f32.partialorder %v377, 0.0
    %vm380 = vcmp.gt.f32.partialorder %v378, 0.0
    %v381 = vsel %vm379, %v377, 1.0
    %v382 = vsel %vm380, %v378, 1.0
    %v383 = vlog2.pop %v381
    %v384 = vmul.f32 %v383, 0.6931472
    %v385 = vlog2.pop %v382
    %v386 = vmul.f32 %v385, 0.6931472
    %v387 = vmul.f32 %v147, %v384
    %v388 = vmul.f32 %v147, %v386
    %v389 = vmul.f32 %v387, 1.442695
    %v390 = vpow.pop %v389
    %v391 = vmul.f32 %v388, 1.442695
    %v392 = vpow.pop %v391
    %v393 = vsel %vm379, %v390, 0.0
    %v394 = vsel %vm380, %v392, 0.0
    %v395 = vsel %vm297, %v393, 0.0
    %v396 = vrot.slane %v395, 4
    %v397 = vadd.f32 %v395, %v396
    %v398 = vrot.slane %v397, 2
    %v399 = vadd.f32 %v397, %v398
    %v400 = vrot.slane %v399, 1
    %v401 = vadd.f32 %v399, %v400
    %v402 = vsel %vm297, %v394, 0.0
    %v403 = vrot.slane %v402, 4
    %v404 = vadd.f32 %v402, %v403
    %v405 = vrot.slane %v404, 2
    %v406 = vadd.f32 %v404, %v405
    %v407 = vrot.slane %v406, 1
    %v408 = vadd.f32 %v406, %v407
    %v409 = vrcp.pop %v401
    %v410 = vmul.f32 %v401, %v409
    %v411 = vsub.f32 1.0, %v410
    %v412 = vmul.f32 %v409, %v411
    %v413 = vadd.f32 %v409, %v412
    %vm414 = vweird.f32 %v401
    %vm415 = vweird.f32 %v409
    %vm416 = vmor %vm414, %vm415
    %v417 = vsel %vm416, %v409, %v413
    %v418 = vand.u32 2147483647, %v401
    %vm419 = vcmp.eq.f32.partialorder %v418, 8.507059e+37
    %v420 = vand.u32 %v401, 2147483648
    %v421 = vor.u32 1.1754944e-38, %v420
    %v422 = vsel %vm419, %v421, %v417
    %v423 = vmul.f32 %v393, %v422
    %v424 = vrcp.pop %v408
    %v425 = vmul.f32 %v408, %v424
    %v426 = vsub.f32 1.0, %v425
    %v427 = vmul.f32 %v424, %v426
    %v428 = vadd.f32 %v424, %v427
    %vm429 = vweird.f32 %v408
    %vm430 = vweird.f32 %v424
    %vm431 = vmor %vm429, %vm430
    %v432 = vsel %vm431, %v424, %v428
    %v433 = vand.u32 2147483647, %v408
    %vm434 = vcmp.eq.f32.partialorder %v433, 8.507059e+37
    %v435 = vand.u32 %v408, 2147483648
    %v436 = vor.u32 1.1754944e-38, %v435
    %v437 = vsel %vm434, %v436, %v432
    %v438 = vmul.f32 %v394, %v437
    %v439 = vld [vmem:[%s12] sm:$0xf]
    %v441 = vsel %vm297, %v423, 0
    %v444 = vsel %vm297, %v438, 0
    %vm446 = vcmask 1043456
    %v448 = vsel %vm446, %v439, 0
    %450 = vmatpush.msra.mxu0 0.0
    %451 = vmatpush.msra.mxu0 0.0
    %452 = vmatpush.msra.mxu0 0.0
    %453 = vmatpush.msra.mxu0 0.0
    %454 = vmatpush.msra.mxu0 0.0
    %455 = vmatpush.msra.mxu0 0.0
    %456 = vmatpush.msra.mxu0 0.0
    %457 = vmatpush.msra.mxu0 0.0
    %458 = vmatpush.msra.mxu0 0.0
    %459 = vmatpush.msra.mxu0 0.0
    %460 = vmatpush.msra.mxu0 0.0
    %461 = vmatpush.msra.mxu0 0.0
    %462 = vmatpush.msra.mxu0 0.0
    %463 = vmatpush.msra.mxu0 0.0
    %464 = vmatpush.msra.mxu0 0.0
    %465 = vmatpush.msra.mxu0 %v448
    %466 = vmatmul.f32.gmra.mxu0 %v441
    %v467 = vpop.f32.mrf.mxu0
    %v468 = vadd.f32 0.0, %v467
    %469 = vmatmul.f32.gmra.mxu0 %v444
    %v470 = vpop.f32.mrf.mxu0
    %v471 = vadd.f32 0.0, %v470
    %472 = vdwg.mxu0
    %v473 = vmul.f32 %v468, %v253
    %v474 = vmul.f32 %v471, %v256
    %v475 = vsel %vm160, %v473, 0.0
    %v476 = vrot.slane %v475, 4
    %v477 = vadd.f32 %v475, %v476
    %v478 = vrot.slane %v477, 2
    %v479 = vadd.f32 %v477, %v478
    %v480 = vrot.slane %v479, 1
    %v481 = vadd.f32 %v479, %v480
    %v482 = vsel %vm160, %v474, 0.0
    %v483 = vrot.slane %v482, 4
    %v484 = vadd.f32 %v482, %v483
    %v485 = vrot.slane %v484, 2
    %v486 = vadd.f32 %v484, %v485
    %v487 = vrot.slane %v486, 1
    %v488 = vadd.f32 %v486, %v487
    %v489 = vld [vmem:[#allocation11] sm:$0xff]
    %v490 = vld [vmem:[#allocation11 + $0x8] sm:$0xff]
    %v491 = vld [vmem:[#allocation11 + $0x10] sm:$0xff]
    %v492 = vld [vmem:[#allocation11 + $0x18] sm:$0xff]
    %v493 = vld [vmem:[%s10] sm:$0x1]
    %v495 = vperm.slane %v493, 0
    %vm499 = vcmask 1041409
    %v500 = vsel %vm499, %v488, %v481
    %v501 = vsel %vm160, %v500, 0
    %503 = vmatpush.msra.mxu0 0.0
    %504 = vmatpush.msra.mxu0 0.0
    %505 = vmatpush.msra.mxu0 0.0
    %506 = vmatpush.msra.mxu0 0.0
    %507 = vmatpush.msra.mxu0 0.0
    %508 = vmatpush.msra.mxu0 0.0
    %509 = vmatpush.msra.mxu0 0.0
    %510 = vmatpush.msra.mxu0 0.0
    %511 = vmatpush.msra.mxu0 0.0
    %512 = vmatpush.msra.mxu0 0.0
    %513 = vmatpush.msra.mxu0 0.0
    %514 = vmatpush.msra.mxu0 0.0
    %515 = vmatpush.msra.mxu0 %v492
    %516 = vmatpush.msra.mxu0 %v491
    %517 = vmatpush.msra.mxu0 %v490
    %518 = vmatpush.msra.mxu0 %v489
    %519 = vmatmul.f32.gmra.mxu0 %v501
    %v520 = vpop.f32.mrf.mxu0
    %v521 = vadd.f32 %v495, %v520
    %522 = vdwg.mxu0
    %vm523 = vcmask 254976
    %524 = vst.msk [vmem:[#allocation12] sm:$0x3] %vm523, %v521
    // Predicated region
    $region81: #{tpu_custom_call.1} parent=1 // pred_check
      _
    $region82: #{tpu_custom_call.1} parent=1 // pred_check_branch
      %526 = sbr.rel (0) target = $region84
    $region83: #{tpu_custom_call.1} parent=1 // pred_region
      %528 = vsyncadd [#allocation5], 0
      %s530 = sshll.u32 [#allocation12], 4
      %s531 = int_to_ptr.vmem [resolvable:$true] %s530
      %s532 = sshll.u32 %s13, 4
      %s533 = int_to_ptr.hbm [resolvable:$true] %s532
      %535 = dma.vmem_to_hbm [thread:$0]  %s531, 32, %s533, [#allocation5]
    $region84: #{tpu_custom_call.1} parent=1 // pred_fallthru
      _
    // Predicated region
    $region85: #{tpu_custom_call.1} parent=1 // pred_check
      _
    $region86: #{tpu_custom_call.1} parent=1 // pred_check_branch
      %537 = sbr.rel (0) target = $region88
    $region87: #{tpu_custom_call.1} parent=1 // pred_region
      %539 = dma.done [#allocation5], 32
    $region88: #{tpu_custom_call.1} parent=1 // pred_fallthru
      _
    %540 = vsyncpa [#allocation4], 1
    %541 = vsyncpa [#allocation7], 1
    %542 = vsyncpa [#allocation10], 1
    %543 = vsyncpa [#allocation5], 1

</llo_original>
